<compile_context>
chip_gen: v6e
topology: v6e:2x2x1
jax: 0.10.0
libtpu: 0.0.40
codegen_flags: <defaults>
</compile_context>

<pallas_src>
import jax
import jax.numpy as jnp
from jax import lax
from jax.experimental import pallas as pl
from jax.experimental.pallas import tpu as pltpu


def _pick_tile(n, target):
    """Largest multiple of 128 that divides n and is <= target (n is a 128-multiple)."""
    t = min(target, n)
    t -= t % 128
    while t >= 128:
        if n % t == 0:
            return t
        t -= 128
    return n


def _err_sum_kernel(diff_ref, tfc_ref, out_ref):
    """Accumulate sum(|diff_i @ tfc_j|) over the j (column-block) grid axis."""
    j = pl.program_id(2)

    @pl.when(j == 0)
    def _():
        out_ref[...] = jnp.zeros_like(out_ref)

    # (TI, C) @ (C, TJ) -> (TI, TJ); bf16 operands, f32 accumulation on the MXU.
    prod = jnp.dot(diff_ref[0], tfc_ref[0], preferred_element_type=jnp.float32)
    err_part = jnp.sum(jnp.abs(prod))          # full reduction, f32
    out_ref[...] = out_ref[...] + err_part     # tiny resident (1,1,1,1) accumulator


@jax.jit
def self_cos_similar_loss(image_features, target_features):
    """Equivalent of SelfCosSimilarLoss(similarity='cos').forward(if, tf)."""
    B, C, H, W = image_features.shape
    N = H * W

    if_cn = image_features.reshape(B, C, N).astype(jnp.float32)
    tf_cn = target_features.reshape(B, C, N).astype(jnp.float32)

    # ---- O(B*C*N) prologue (plain JAX, negligible vs. the N^2 stream) ----
    tf_mean = jnp.mean(tf_cn, axis=2, keepdims=True)                     # (B, C, 1)
    ifc = if_cn - tf_mean
    tfc = tf_cn - tf_mean
    # No epsilon: matches the reference's unprotected divide.
    ifc = ifc * lax.rsqrt(jnp.sum(ifc * ifc, axis=1, keepdims=True))
    tfc = tfc * lax.rsqrt(jnp.sum(tfc * tfc, axis=1, keepdims=True))
    diff = tfc - ifc                                                     # (B, C, N) f32

    # diag(|fsm - ssm|)[b, n] = |sum_c diff[b,c,n] * tfc[b,c,n]| ; summed per batch (f32).
    diag_sums = jnp.sum(jnp.abs(jnp.sum(diff * tfc, axis=1)), axis=1)    # (B,)

    # ---- pad N up to a lane-dense multiple of 128 AFTER normalization ----
    # Zero-padded diff rows / tfc columns contribute exactly 0 to the err sum.
    n_pad = -(-N // 128) * 128
    if n_pad != N:
        pad = n_pad - N
        diff = jnp.pad(diff, ((0, 0), (0, 0), (0, pad)))
        tfc = jnp.pad(tfc, ((0, 0), (0, 0), (0, pad)))

    # bf16 streams for the MXU; (N, C) layout for diff avoids a per-step LHS transpose.
    diff_nc = jnp.transpose(diff, (0, 2, 1)).astype(jnp.bfloat16)        # (B, Npad, C)
    tfc_cn = tfc.astype(jnp.bfloat16)                                    # (B, C, Npad)

    ti = _pick_tile(n_pad, 1024)   # row block of the N x N error matrix
    tj = _pick_tile(n_pad, 1024)   # column block (lane-dense)
    ni, nj = n_pad // ti, n_pad // tj

    out = pl.pallas_call(
        _err_sum_kernel,
        out_shape=jax.ShapeDtypeStruct((B, ni, 1, 1), jnp.float32),
        grid_spec=pltpu.PrefetchScalarGridSpec(
            num_scalar_prefetch=0,
            grid=(B, ni, nj),
            in_specs=[
                pl.BlockSpec((1, ti, C), lambda b, i, j: (b, i, 0)),   # diff rows i
                pl.BlockSpec((1, C, tj), lambda b, i, j: (b, 0, j)),   # tfc cols j
            ],
            out_specs=pl.BlockSpec((1, 1, 1, 1), lambda b, i, j: (b, i, 0, 0)),
        ),
        compiler_params=pltpu.CompilerParams(
            dimension_semantics=("parallel", "parallel", "arbitrary"),
            vmem_limit_bytes=32 * 1024 * 1024),
    )(diff_nc, tfc_cn)

    err_sums = jnp.sum(out[:, :, 0, 0], axis=1)                          # (B,)

    # CX(): err has shape (C=B, H=N, W=N) in the PyTorch code.
    cx_loss_final = jnp.mean(diag_sums / N)          # mean of per-batch diag means
    testv2 = jnp.sum(err_sums) / B / N / 100.0
    cs_loss = 0.02 * testv2
    return cs_loss + cx_loss_final


def _reference(image_features, target_features):
    """Pure-JAX f32 reference mirroring the PyTorch code (sanity check)."""
    def cos_sim(imf, tgf):
        B, C, H, W = imf.shape
        ifv = jnp.transpose(imf.reshape(B, C, -1), (0, 2, 1))
        tfv = jnp.transpose(tgf.reshape(B, C, -1), (0, 2, 1))
        tfm = jnp.mean(tfv, axis=1, keepdims=True)
        ifc = ifv - tfm
        tfc = tfv - tfm
        ifc = ifc / jnp.sqrt(jnp.sum(ifc * ifc, axis=2, keepdims=True))
        tfc = tfc / jnp.sqrt(jnp.sum(tfc * tfc, axis=2, keepdims=True))
        return 1.0 - jnp.einsum('bnc,bmc->bnm', ifc, tfc)

    fsm = cos_sim(image_features, target_features)
    ssm = cos_sim(target_features, target_features)
    err = jnp.abs(fsm - ssm)
    Cb, Hn, Wn = err.shape
    diag = jnp.diagonal(err, axis1=1, axis2=2)                           # (B, N)
    cx_final = jnp.sum(jnp.mean(diag, axis=1)) / Cb
    cs = 0.02 * (jnp.sum(err) / Cb / Hn / 100.0)
    return cs + cx_final


if __name__ == "__main__":
    key = jax.random.PRNGKey(0)
    k1, k2, k3, k4, k5, k6 = jax.random.split(key, 6)

    # bf16 MXU streams: slightly looser tolerance than the pure-f32 version.
    RTOL, ATOL = 2e-3, 1e-4

    # Check 1: small NCHW feature maps (single-tile path): B=2, C=4, 16x16.
    imf = jax.random.normal(k1, (2, 4, 16, 16), dtype=jnp.float32)
    tgf = jax.random.normal(k2, (2, 4, 16, 16), dtype=jnp.float32)
    loss = jax.block_until_ready(self_cos_similar_loss(imf, tgf))
    ref = jax.block_until_ready(_reference(imf, tgf))
    assert jnp.isfinite(loss), "non-finite loss (small)"
    assert jnp.allclose(loss, ref, rtol=RTOL, atol=ATOL), (loss, ref)

    # Check 2: larger single-tile case: B=2, C=8, 32x32 -> N=1024.
    imf2 = jax.random.normal(k3, (2, 8, 32, 32), dtype=jnp.float32)
    tgf2 = jax.random.normal(k4, (2, 8, 32, 32), dtype=jnp.float32)
    loss2 = jax.block_until_ready(self_cos_similar_loss(imf2, tgf2))
    ref2 = jax.block_until_ready(_reference(imf2, tgf2))
    assert jnp.isfinite(loss2), "non-finite loss (1024)"
    assert jnp.allclose(loss2, ref2, rtol=RTOL, atol=ATOL), (loss2, ref2)

    # Check 3: non-128-multiple N (40x40=1600 -> padded to 1664) exercising the
    # padding + multi-(i, j)-tile accumulation path.
    imf3 = jax.random.normal(k5, (1, 8, 40, 40), dtype=jnp.float32)
    tgf3 = jax.random.normal(k6, (1, 8, 40, 40), dtype=jnp.float32)
    loss3 = jax.block_until_ready(self_cos_similar_loss(imf3, tgf3))
    ref3 = jax.block_until_ready(_reference(imf3, tgf3))
    assert jnp.isfinite(loss3), "non-finite loss (padded/tiled)"
    assert jnp.allclose(loss3, ref3, rtol=RTOL, atol=ATOL), (loss3, ref3)

    print("KERNEL_OK")
</pallas_src>

<mosaic_0001>
module attributes {stable_mosaic.version = 11 : i64} {
  func.func @_err_sum_kernel(%arg0: i32, %arg1: i32, %arg2: i32, %arg3: memref<1x256x4xbf16, #tpu.memory_space<vmem>>, %arg4: memref<1x4x256xbf16, #tpu.memory_space<vmem>>, %arg5: memref<1x1x1x1xf32, #tpu.memory_space<vmem>>) attributes {dimension_semantics = [#tpu.dimension_semantics<parallel>, #tpu.dimension_semantics<parallel>, #tpu.dimension_semantics<arbitrary>], iteration_bounds = array<i64: 2, 1, 1>, scalar_prefetch = 0 : i64, scratch_operands = 0 : i64, tpu.core_type = #tpu.core_type<tc>, window_params = [{transform_indices = @transform_0, window_bounds = array<i64: 1, 256, 4>}, {transform_indices = @transform_1, window_bounds = array<i64: 1, 4, 256>}, {transform_indices = @transform_2, window_bounds = array<i64: 1, 1, 1, 1>}]} {
    %c0_i32 = arith.constant 0 : i32
    %0 = arith.cmpi eq, %arg2, %c0_i32 : i32
    %1 = arith.extui %0 : i1 to i32
    %c0_i32_0 = arith.constant 0 : i32
    %2 = arith.cmpi ne, %1, %c0_i32_0 : i32
    scf.if %2 {
      %cst_15 = arith.constant 0.000000e+00 : f32
      %17 = vector.broadcast %cst_15 : f32 to vector<1x1x1x1xf32>
      %c0_16 = arith.constant 0 : index
      %c0_17 = arith.constant 0 : index
      %c0_18 = arith.constant 0 : index
      %c0_19 = arith.constant 0 : index
      %18 = vector.load %arg5[%c0_16, %c0_17, %c0_18, %c0_19] : memref<1x1x1x1xf32, #tpu.memory_space<vmem>>, vector<1x1x1x1xf32>
      tpu.vector_store %arg5[%c0_16, %c0_17, %c0_18, %c0_19], %17 {strides = array<i32>} : memref<1x1x1x1xf32, #tpu.memory_space<vmem>>, vector<1x1x1x1xf32>,
    } else {
    }
    %c0 = arith.constant 0 : index
    %c0_1 = arith.constant 0 : index
    %c0_2 = arith.constant 0 : index
    %3 = vector.load %arg3[%c0, %c0_1, %c0_2] : memref<1x256x4xbf16, #tpu.memory_space<vmem>>, vector<1x256x4xbf16>
    %4 = vector.shape_cast %3 : vector<1x256x4xbf16> to vector<256x4xbf16>
    %c0_3 = arith.constant 0 : index
    %c0_4 = arith.constant 0 : index
    %c0_5 = arith.constant 0 : index
    %5 = vector.load %arg4[%c0_3, %c0_4, %c0_5] : memref<1x4x256xbf16, #tpu.memory_space<vmem>>, vector<1x4x256xbf16>
    %6 = vector.shape_cast %5 : vector<1x4x256xbf16> to vector<4x256xbf16>
    %cst = arith.constant dense<0.000000e+00> : vector<256x256xf32>
    %7 = tpu.matmul %4, %6, %cst {dimension_numbers = #tpu.dot_dimension_numbers<[1], [0], [0], [1], [0, 0, 1, 1], [], []>} : vector<256x4xbf16>, vector<4x256xbf16>, vector<256x256xf32> -> vector<256x256xf32>
    %8 = math.absf %7 : vector<256x256xf32>
    %9 = vector.shape_cast %8 : vector<256x256xf32> to vector<1x256x256xf32>
    %cst_6 = arith.constant dense<0.000000e+00> : vector<1xf32>
    %10 = vector.multi_reduction <add>, %9, %cst_6 [1, 2] : vector<1x256x256xf32> to vector<1xf32>
    %11 = vector.shape_cast %10 : vector<1xf32> to vector<1x1x1xf32>
    %12 = vector.extract %11[0, 0, 0] : f32 from vector<1x1x1xf32>
    %c0_7 = arith.constant 0 : index
    %c0_8 = arith.constant 0 : index
    %c0_9 = arith.constant 0 : index
    %c0_10 = arith.constant 0 : index
    %13 = vector.load %arg5[%c0_7, %c0_8, %c0_9, %c0_10] : memref<1x1x1x1xf32, #tpu.memory_space<vmem>>, vector<1x1x1x1xf32>
    %14 = vector.broadcast %12 : f32 to vector<1x1x1x1xf32>
    %15 = arith.addf %13, %14 : vector<1x1x1x1xf32>
    %c0_11 = arith.constant 0 : index
    %c0_12 = arith.constant 0 : index
    %c0_13 = arith.constant 0 : index
    %c0_14 = arith.constant 0 : index
    %16 = vector.load %arg5[%c0_11, %c0_12, %c0_13, %c0_14] : memref<1x1x1x1xf32, #tpu.memory_space<vmem>>, vector<1x1x1x1xf32>
    tpu.vector_store %arg5[%c0_11, %c0_12, %c0_13, %c0_14], %15 {strides = array<i32>} : memref<1x1x1x1xf32, #tpu.memory_space<vmem>>, vector<1x1x1x1xf32>,
    return
  }
  func.func @transform_0(%arg0: i32, %arg1: i32, %arg2: i32) -> (i32, i32, i32) {
    %c0_i32 = arith.constant 0 : i32
    %c0_i32_0 = arith.constant 0 : i32
    return %arg0, %arg1, %c0_i32 : i32, i32, i32
  }
  func.func @transform_1(%arg0: i32, %arg1: i32, %arg2: i32) -> (i32, i32, i32) {
    %c0_i32 = arith.constant 0 : i32
    %c0_i32_0 = arith.constant 0 : i32
    return %arg0, %c0_i32, %arg2 : i32, i32, i32
  }
  func.func @transform_2(%arg0: i32, %arg1: i32, %arg2: i32) -> (i32, i32, i32, i32) {
    %c0_i32 = arith.constant 0 : i32
    %c0_i32_0 = arith.constant 0 : i32
    %c0_i32_1 = arith.constant 0 : i32
    return %arg0, %arg1, %c0_i32, %c0_i32_0 : i32, i32, i32, i32
  }
}

</mosaic_0001>

<llo_original>
// kernel: self_cos_similar_loss.1
$region0: #{self_cos_similar_loss.1}
  #allocation0 [shape = 'u32[]', space=smem, size = 0x4, offset = 0x4, fixed_abs, tag = 'smem constant byte address 0x4 - core index']
  #allocation1 [shape = 'u32[144,128]{1,0:T(1,128)}', space=vmem, size = 0x12000, scoped, tag = 'internal scratch']
  %s0 = inlined_call_operand.vmem [shape: bf16[2,256,4], index: 0, kind: input, shape index: {}]
  %s1 = inlined_call_operand.vmem [shape: bf16[2,4,256], index: 1, kind: input, shape index: {}]
  %s2 = inlined_call_operand.vmem [shape: f32[2,1,1,1], index: 2, kind: output, shape index: {}]
  %s3 = sld [smem:[#allocation0]]
  $region45: #{self_cos_similar_loss.1} parent=0
    _
  %s5 = ssub.s32 1, %s3
  %s6 = scalar_select 0, %s5, %s3
  loop: start=0, step=1, limit=4
  $region2: #{self_cos_similar_loss.1} parent=0 // loop_pre_header
    _
  $region3: #{self_cos_similar_loss.1} parent=0 // loop_header
    %s8 = sphi 0, %s12
    %p9 = scmp.ge.s32.totalorder %s8, 4
    %s15 = sphi 0, %s34
    %s16 = sphi 0, %s30
    %s17 = sphi 0, %s26
    %s18 = sphi 0, %s15
    %s19 = sphi 0, %s16
    %s20 = sphi 0, %s17
    %s21 = sphi 0, %s18
    %s22 = sphi 0, %s19
    %s23 = sphi 0, %s20
    %s39 = sphi 0, %s41
    %s42 = sphi 0, %s39
    %s43 = sphi 0, %s42
    %s59 = sphi 0, %s43
    %s67 = sphi 0, %s69
    %s70 = sphi 0, %s67
    %s71 = sphi 0, %s70
    %s87 = sphi 0, %s71
    %s95 = sphi 0, %s97
    %s98 = sphi 0, %s95
    %s99 = sphi 0, %s98
    %s115 = sphi 0, %s99
  $region4: #{self_cos_similar_loss.1} parent=0 // loop_header_branch
    %11 = sbr.rel (%p9) target = $region8
  $region5: #{self_cos_similar_loss.1} parent=0 // loop_body
    %s13 = ssub.s32 %s8, 1
    %s14 = ssub.s32 %s8, 2
    %s24 = sadd.s32 1, %s17
    %p25 = scmp.ge.s32.totalorder %s24, 1
    %s26 = scalar_select %p25, 0, %s24
    %s27 = sadd.s32 1, %s16
    %s28 = scalar_select %p25, %s27, %s16
    %p29 = scmp.ge.s32.totalorder %s28, 1
    %s30 = scalar_select %p29, 0, %s28
    %s31 = sadd.s32 1, %s15
    %s32 = scalar_select %p29, %s31, %s15
    %p33 = scmp.ge.s32.totalorder %s32, 2
    %s34 = scalar_select %p33, 0, %s32
    %s35 = ssub.s32 %s15, %s34
    %s36 = ssub.s32 %s16, %s30
    %s37 = sor.u32 %s35, %s36
    %p38 = scmp.eq.s32.totalorder %s37, 0
    %s40 = sadd.s32 %s39, 1
    %s41 = scalar_select %p38, %s39, %s40
    %p44 = pneg %p38
    %p45 = scmp.eq.s32.totalorder %s8, 1
    %p46 = por %p44, %p45
    %p47 = scmp.ne.s32.totalorder %s39, %s42
    %p48 = scmp.eq.s32.totalorder %s8, 0
    %p49 = por %p47, %p48
    %p50 = scmp.ne.s32.totalorder %s39, %s42
    %p51 = scmp.eq.s32.totalorder %s13, 1
    %p52 = por %p50, %p51
    %p53 = scmp.ne.s32.totalorder %s42, %s43
    %p54 = scmp.eq.s32.totalorder %s13, 0
    %p55 = por %p53, %p54
    %p56 = scmp.ne.s32.totalorder %s42, %s43
    %p57 = scmp.eq.s32.totalorder %s14, 1
    %p58 = por %p56, %p57
    %p60 = scmp.ne.s32.totalorder %s43, %s59
    %p61 = scmp.eq.s32.totalorder %s14, 0
    %p62 = por %p60, %p61
    %s63 = ssub.s32 %s15, %s34
    %s64 = ssub.s32 %s17, %s26
    %s65 = sor.u32 %s63, %s64
    %p66 = scmp.eq.s32.totalorder %s65, 0
    %s68 = sadd.s32 %s67, 1
    %s69 = scalar_select %p66, %s67, %s68
    %p72 = pneg %p66
    %p73 = scmp.eq.s32.totalorder %s8, 1
    %p74 = por %p72, %p73
    %p75 = scmp.ne.s32.totalorder %s67, %s70
    %p76 = scmp.eq.s32.totalorder %s8, 0
    %p77 = por %p75, %p76
    %p78 = scmp.ne.s32.totalorder %s67, %s70
    %p79 = scmp.eq.s32.totalorder %s13, 1
    %p80 = por %p78, %p79
    %p81 = scmp.ne.s32.totalorder %s70, %s71
    %p82 = scmp.eq.s32.totalorder %s13, 0
    %p83 = por %p81, %p82
    %p84 = scmp.ne.s32.totalorder %s70, %s71
    %p85 = scmp.eq.s32.totalorder %s14, 1
    %p86 = por %p84, %p85
    %p88 = scmp.ne.s32.totalorder %s71, %s87
    %p89 = scmp.eq.s32.totalorder %s14, 0
    %p90 = por %p88, %p89
    %s91 = ssub.s32 %s15, %s34
    %s92 = ssub.s32 %s16, %s30
    %s93 = sor.u32 %s91, %s92
    %p94 = scmp.eq.s32.totalorder %s93, 0
    %s96 = sadd.s32 %s95, 1
    %s97 = scalar_select %p94, %s95, %s96
    %p100 = pneg %p94
    %p101 = scmp.eq.s32.totalorder %s8, 1
    %p102 = por %p100, %p101
    %p103 = scmp.ne.s32.totalorder %s95, %s98
    %p104 = scmp.eq.s32.totalorder %s8, 0
    %p105 = por %p103, %p104
    %p106 = scmp.ne.s32.totalorder %s95, %s98
    %p107 = scmp.eq.s32.totalorder %s13, 1
    %p108 = por %p106, %p107
    %p109 = scmp.ne.s32.totalorder %s98, %s99
    %p110 = scmp.eq.s32.totalorder %s13, 0
    %p111 = por %p109, %p110
    %p112 = scmp.ne.s32.totalorder %s98, %s99
    %p113 = scmp.eq.s32.totalorder %s14, 1
    %p114 = por %p112, %p113
    %p116 = scmp.ne.s32.totalorder %s99, %s115
    %p117 = scmp.eq.s32.totalorder %s14, 0
    %p118 = por %p116, %p117
    %p119 = scmp.le.s32.totalorder 1, %s8
    %p120 = scmp.lt.s32.totalorder %s8, 3
    %p121 = pnand %p119, %p120
    %p122 = pneg %p121
    // Predicated region
    $region9: #{self_cos_similar_loss.1} parent=5 // pred_check
      _
    $region10: #{self_cos_similar_loss.1} parent=5 // pred_check_branch
      %124 = sbr.rel (%p121) target = $region12
    $region11: #{self_cos_similar_loss.1} parent=5 // pred_region
      %s125 = ssub.s32 %s8, 1
    $region12: #{self_cos_similar_loss.1} parent=5 // pred_fallthru
      _
    %p126 = scmp.lt.s32.totalorder %s8, 2
    // Predicated region
    $region13: #{self_cos_similar_loss.1} parent=5 // pred_check
      %p127 = pneg %p126
    $region14: #{self_cos_similar_loss.1} parent=5 // pred_check_branch
      %129 = sbr.rel (%p127) target = $region16
    $region15: #{self_cos_similar_loss.1} parent=5 // pred_region
      // Predicated region
      $region17: #{self_cos_similar_loss.1} parent=15 // pred_check
        %p130 = pneg %p49
      $region18: #{self_cos_similar_loss.1} parent=15 // pred_check_branch
        %132 = sbr.rel (%p130) target = $region20
      $region19: #{self_cos_similar_loss.1} parent=15 // pred_region
        %s133 = smul.u32 32, %s16
        %p134 = scmp.lt.s32.totalorder %s15, 1
        %s135 = scalar_select %p134, %s15, 1
        %p136 = scmp.lt.s32.totalorder %s133, 31
        %s137 = scalar_select %p136, %s133, 31
        %s138 = smul.addr %s135, 32
        %s139 = sadd.s32 %s137, %s138
        %s140 = smul.addr %s139, 4
        %s141 = scalar_lea.vmem %s0, %s140
        %s142 = smul.u32 32, %s16
      $region20: #{self_cos_similar_loss.1} parent=15 // pred_fallthru
        _
      // Predicated region
      $region21: #{self_cos_similar_loss.1} parent=15 // pred_check
        %p143 = pneg %p77
      $region22: #{self_cos_similar_loss.1} parent=15 // pred_check_branch
        %145 = sbr.rel (%p143) target = $region24
      $region23: #{self_cos_similar_loss.1} parent=15 // pred_region
        %s146 = smul.u32 2, %s17
        %p147 = scmp.lt.s32.totalorder %s15, 1
        %s148 = scalar_select %p147, %s15, 1
        %p149 = scmp.lt.s32.totalorder %s146, 1
        %s150 = scalar_select %p149, %s146, 1
        %s151 = smul.addr %s148, 2
        %s152 = sadd.s32 %s150, %s151
        %s153 = smul.addr %s152, 2
        %s154 = scalar_lea.vmem %s1, %s153
        %s155 = smul.u32 2, %s17
      $region24: #{self_cos_similar_loss.1} parent=15 // pred_fallthru
        _
    $region16: #{self_cos_similar_loss.1} parent=5 // pred_fallthru
      _
    %p156 = scmp.le.s32.totalorder 1, %s8
    %p157 = scmp.lt.s32.totalorder %s8, 3
    %p158 = pnand %p156, %p157
    %p159 = pneg %p158
    // Predicated region
    $region25: #{self_cos_similar_loss.1} parent=5 // pred_check
      _
    $region26: #{self_cos_similar_loss.1} parent=5 // pred_check_branch
      %161 = sbr.rel (%p158) target = $region28
    $region27: #{self_cos_similar_loss.1} parent=5 // pred_region
      %s162 = ssub.s32 %s8, 1
      %s163 = smul.u32 32, %s19
      %p164 = scmp.lt.s32.totalorder %s18, 1
      %s165 = scalar_select %p164, %s18, 1
      %p166 = scmp.lt.s32.totalorder %s163, 31
      %s167 = scalar_select %p166, %s163, 31
      %s168 = smul.addr %s165, 32
      %s169 = sadd.s32 %s167, %s168
      %s170 = smul.addr %s169, 4
      %s171 = scalar_lea.vmem %s0, %s170
      %p172 = pneg %p55
      %p173 = pneg %p52
      %s174 = smul.u32 2, %s20
      %p175 = scmp.lt.s32.totalorder %s18, 1
      %s176 = scalar_select %p175, %s18, 1
      %p177 = scmp.lt.s32.totalorder %s174, 1
      %s178 = scalar_select %p177, %s174, 1
      %s179 = smul.addr %s176, 2
      %s180 = sadd.s32 %s178, %s179
      %s181 = smul.addr %s180, 2
      %s182 = scalar_lea.vmem %s1, %s181
      %p183 = pneg %p83
      %p184 = pneg %p80
      %p185 = pneg %p111
      %p186 = pneg %p108
      %p187 = scmp.lt.s32.totalorder %s18, 1
      %s188 = scalar_select %p187, %s18, 1
      %p189 = scmp.lt.s32.totalorder %s19, 0
      %s190 = scalar_select %p189, %s19, 0
      %s191 = sadd.s32 %s190, %s188
      %s192 = scalar_lea.vmem %s2, %s191
      %s193 = smul.u32 32, %s19
      %p194 = scmp.lt.s32.totalorder %s18, 1
      %s195 = scalar_select %p194, %s18, 1
      %p196 = scmp.lt.s32.totalorder %s193, 31
      %s197 = scalar_select %p196, %s193, 31
      %s198 = smul.addr %s195, 32
      %s199 = sadd.s32 %s197, %s198
      %s200 = smul.addr %s199, 4
      %s201 = scalar_lea.vmem %s0, %s200
      %s202 = smul.u32 32, %s19
      %s203 = smul.u32 2, %s20
      %p204 = scmp.lt.s32.totalorder %s18, 1
      %s205 = scalar_select %p204, %s18, 1
      %p206 = scmp.lt.s32.totalorder %s203, 1
      %s207 = scalar_select %p206, %s203, 1
      %s208 = smul.addr %s205, 2
      %s209 = sadd.s32 %s207, %s208
      %s210 = smul.addr %s209, 2
      %s211 = scalar_lea.vmem %s1, %s210
      %s212 = smul.u32 2, %s20
      %p213 = scmp.lt.s32.totalorder %s18, 1
      %s214 = scalar_select %p213, %s18, 1
      %p215 = scmp.lt.s32.totalorder %s19, 0
      %s216 = scalar_select %p215, %s19, 0
      %s217 = sadd.s32 %s216, %s214
      %s218 = scalar_lea.vmem %s2, %s217
      %p220 = scmp.eq.s32.totalorder %s20, 0
      // Predicated region
      $region29: #{self_cos_similar_loss.1} parent=27 // pred_check
        %p221 = pneg %p220
      $region30: #{self_cos_similar_loss.1} parent=27 // pred_check_branch
        %223 = sbr.rel (%p221) target = $region32
      $region31: #{self_cos_similar_loss.1} parent=27 // pred_region
        %vm224 = vcmask 0
        %225 = vst.msk [vmem:[%s218] sm:$0x1] %vm224, 0.0
      $region32: #{self_cos_similar_loss.1} parent=27 // pred_fallthru
        _
      %v226 = vld [vmem:[%s201] sm:$0xf]
      %v227 = vld [vmem:[%s201 + $0x4] sm:$0xf]
      %v228 = vld [vmem:[%s201 + $0x8] sm:$0xf]
      %v229 = vld [vmem:[%s201 + $0xc] sm:$0xf]
      %v230 = vld [vmem:[%s201 + $0x10] sm:$0xf]
      %v231 = vld [vmem:[%s201 + $0x14] sm:$0xf]
      %v232 = vld [vmem:[%s201 + $0x18] sm:$0xf]
      %v233 = vld [vmem:[%s201 + $0x1c] sm:$0xf]
      %v234 = vld [vmem:[%s201 + $0x20] sm:$0xf]
      %v235 = vld [vmem:[%s201 + $0x24] sm:$0xf]
      %v236 = vld [vmem:[%s201 + $0x28] sm:$0xf]
      %v237 = vld [vmem:[%s201 + $0x2c] sm:$0xf]
      %v238 = vld [vmem:[%s201 + $0x30] sm:$0xf]
      %v239 = vld [vmem:[%s201 + $0x34] sm:$0xf]
      %v240 = vld [vmem:[%s201 + $0x38] sm:$0xf]
      %v241 = vld [vmem:[%s201 + $0x3c] sm:$0xf]
      %v242 = vld [vmem:[%s201 + $0x40] sm:$0xf]
      %v243 = vld [vmem:[%s201 + $0x44] sm:$0xf]
      %v244 = vld [vmem:[%s201 + $0x48] sm:$0xf]
      %v245 = vld [vmem:[%s201 + $0x4c] sm:$0xf]
      %v246 = vld [vmem:[%s201 + $0x50] sm:$0xf]
      %v247 = vld [vmem:[%s201 + $0x54] sm:$0xf]
      %v248 = vld [vmem:[%s201 + $0x58] sm:$0xf]
      %v249 = vld [vmem:[%s201 + $0x5c] sm:$0xf]
      %v250 = vld [vmem:[%s201 + $0x60] sm:$0xf]
      %v251 = vld [vmem:[%s201 + $0x64] sm:$0xf]
      %v252 = vld [vmem:[%s201 + $0x68] sm:$0xf]
      %v253 = vld [vmem:[%s201 + $0x6c] sm:$0xf]
      %v254 = vld [vmem:[%s201 + $0x70] sm:$0xf]
      %v255 = vld [vmem:[%s201 + $0x74] sm:$0xf]
      %v256 = vld [vmem:[%s201 + $0x78] sm:$0xf]
      %v257 = vld [vmem:[%s201 + $0x7c] sm:$0xf]
      %v258 = vld [vmem:[%s211] sm:$0xf]
      %v291 = vunpack.c.l.b16 %v226
      %v292 = vunpack.c.l.b16 %v227
      %v293 = vunpack.c.l.b16 %v228
      %v294 = vunpack.c.l.b16 %v229
      %v295 = vunpack.c.l.b16 %v230
      %v296 = vunpack.c.l.b16 %v231
      %v297 = vunpack.c.l.b16 %v232
      %v298 = vunpack.c.l.b16 %v233
      %v299 = vunpack.c.l.b16 %v234
      %v300 = vunpack.c.l.b16 %v235
      %v301 = vunpack.c.l.b16 %v236
      %v302 = vunpack.c.l.b16 %v237
      %v303 = vunpack.c.l.b16 %v238
      %v304 = vunpack.c.l.b16 %v239
      %v305 = vunpack.c.l.b16 %v240
      %v306 = vunpack.c.l.b16 %v241
      %v307 = vunpack.c.l.b16 %v242
      %v308 = vunpack.c.l.b16 %v243
      %v309 = vunpack.c.l.b16 %v244
      %v310 = vunpack.c.l.b16 %v245
      %v311 = vunpack.c.l.b16 %v246
      %v312 = vunpack.c.l.b16 %v247
      %v313 = vunpack.c.l.b16 %v248
      %v314 = vunpack.c.l.b16 %v249
      %v315 = vunpack.c.l.b16 %v250
      %v316 = vunpack.c.l.b16 %v251
      %v317 = vunpack.c.l.b16 %v252
      %v318 = vunpack.c.l.b16 %v253
      %v319 = vunpack.c.l.b16 %v254
      %v320 = vunpack.c.l.b16 %v255
      %v321 = vunpack.c.l.b16 %v256
      %v322 = vunpack.c.l.b16 %v257
      %v323 = vpack.c.b16 %v292, %v291
      %v324 = vpack.c.b16 %v294, %v293
      %v325 = vpack.c.b16 %v296, %v295
      %v326 = vpack.c.b16 %v298, %v297
      %v327 = vpack.c.b16 %v300, %v299
      %v328 = vpack.c.b16 %v302, %v301
      %v329 = vpack.c.b16 %v304, %v303
      %v330 = vpack.c.b16 %v306, %v305
      %v331 = vpack.c.b16 %v308, %v307
      %v332 = vpack.c.b16 %v310, %v309
      %v333 = vpack.c.b16 %v312, %v311
      %v334 = vpack.c.b16 %v314, %v313
      %v335 = vpack.c.b16 %v316, %v315
      %v336 = vpack.c.b16 %v318, %v317
      %v337 = vpack.c.b16 %v320, %v319
      %v338 = vpack.c.b16 %v322, %v321
      %v341 = vunpack.c.l.s4 1983009808
      %v342 = vunpack.c.0.s8 %v341
      %v343 = vlaneseq
      %v344 = vshrl.u32 %v343, 7
      %v345 = vsub.s32 %v342, %v344
      %v346 = vrot.slane %v258, %v345
      %v347 = vcombine.high %v346, %v346
      %vm348 = vcmask 31744
      %v350 = vsel %vm348, %v323, 0
      %v353 = vsel %vm348, %v324, 0
      %v356 = vsel %vm348, %v325, 0
      %v359 = vsel %vm348, %v326, 0
      %v362 = vsel %vm348, %v327, 0
      %v365 = vsel %vm348, %v328, 0
      %v368 = vsel %vm348, %v329, 0
      %v371 = vsel %vm348, %v330, 0
      %v374 = vsel %vm348, %v331, 0
      %v377 = vsel %vm348, %v332, 0
      %v380 = vsel %vm348, %v333, 0
      %v383 = vsel %vm348, %v334, 0
      %v386 = vsel %vm348, %v335, 0
      %v389 = vsel %vm348, %v336, 0
      %v392 = vsel %vm348, %v337, 0
      %v395 = vsel %vm348, %v338, 0
      %vm397 = vcmask 1041408
      %v399 = vsel %vm397, %v346, 0
      %v402 = vsel %vm397, %v347, 0
      %404 = vmatprep.subr.bf16.mxu0 0
      %405 = vmatpush1.bf16.msra.mxu0 0
      %406 = vmatprep.subr.bf16.mxu0 0
      %407 = vmatpush1.bf16.msra.mxu0 0
      %408 = vmatprep.subr.bf16.mxu0 0
      %409 = vmatpush1.bf16.msra.mxu0 0
      %410 = vmatprep.subr.bf16.mxu0 0
      %411 = vmatpush1.bf16.msra.mxu0 0
      %412 = vmatprep.subr.bf16.mxu0 0
      %413 = vmatpush1.bf16.msra.mxu0 0
      %414 = vmatprep.subr.bf16.mxu0 0
      %415 = vmatpush1.bf16.msra.mxu0 0
      %416 = vmatprep.subr.bf16.mxu0 0
      %417 = vmatpush1.bf16.msra.mxu0 0
      %418 = vmatprep.subr.bf16.mxu0 %v402
      %419 = vmatpush1.bf16.msra.mxu0 %v399
      %420 = vmatprep.subr.bf16.mxu0 0
      %421 = vmatpush2.bf16.msra.mxu0 0
      %422 = vmatprep.subr.bf16.mxu0 0
      %423 = vmatpush2.bf16.msra.mxu0 0
      %424 = vmatprep.subr.bf16.mxu0 0
      %425 = vmatpush2.bf16.msra.mxu0 0
      %426 = vmatprep.subr.bf16.mxu0 0
      %427 = vmatpush2.bf16.msra.mxu0 0
      %428 = vmatprep.subr.bf16.mxu0 0
      %429 = vmatpush2.bf16.msra.mxu0 0
      %430 = vmatprep.subr.bf16.mxu0 0
      %431 = vmatpush2.bf16.msra.mxu0 0
      %432 = vmatprep.subr.bf16.mxu0 0
      %433 = vmatpush2.bf16.msra.mxu0 0
      %434 = vmatprep.subr.bf16.mxu0 0
      %435 = vmatpush2.bf16.msra.mxu0 0
      %436 = vmatprep.mubr.bf16.mxu0 0
      %437 = vmatmul.mubr.bf16.gmra.mxu0 %v350
      %v438 = vpop.f32.mrf.mxu0
      %v439 = vadd.f32 0.0, %v438
      %v440 = vpop.f32.mrf.mxu0
      %v441 = vadd.f32 0.0, %v440
      %v442 = vpop.f32.mrf.mxu0
      %v443 = vadd.f32 0.0, %v442
      %v444 = vpop.f32.mrf.mxu0
      %v445 = vadd.f32 0.0, %v444
      %446 = vmatprep.mubr.bf16.mxu0 0
      %447 = vmatmul.mubr.bf16.gmra.mxu0 %v353
      %v448 = vpop.f32.mrf.mxu0
      %v449 = vadd.f32 0.0, %v448
      %v450 = vpop.f32.mrf.mxu0
      %v451 = vadd.f32 0.0, %v450
      %v452 = vpop.f32.mrf.mxu0
      %v453 = vadd.f32 0.0, %v452
      %v454 = vpop.f32.mrf.mxu0
      %v455 = vadd.f32 0.0, %v454
      %456 = vmatprep.mubr.bf16.mxu0 0
      %457 = vmatmul.mubr.bf16.gmra.mxu0 %v356
      %v458 = vpop.f32.mrf.mxu0
      %v459 = vadd.f32 0.0, %v458
      %v460 = vpop.f32.mrf.mxu0
      %v461 = vadd.f32 0.0, %v460
      %v462 = vpop.f32.mrf.mxu0
      %v463 = vadd.f32 0.0, %v462
      %v464 = vpop.f32.mrf.mxu0
      %v465 = vadd.f32 0.0, %v464
      %466 = vmatprep.mubr.bf16.mxu0 0
      %467 = vmatmul.mubr.bf16.gmra.mxu0 %v359
      %v468 = vpop.f32.mrf.mxu0
      %v469 = vadd.f32 0.0, %v468
      %v470 = vpop.f32.mrf.mxu0
      %v471 = vadd.f32 0.0, %v470
      %v472 = vpop.f32.mrf.mxu0
      %v473 = vadd.f32 0.0, %v472
      %v474 = vpop.f32.mrf.mxu0
      %v475 = vadd.f32 0.0, %v474
      %476 = vmatprep.mubr.bf16.mxu0 0
      %477 = vmatmul.mubr.bf16.gmra.mxu0 %v362
      %v478 = vpop.f32.mrf.mxu0
      %v479 = vadd.f32 0.0, %v478
      %v480 = vpop.f32.mrf.mxu0
      %v481 = vadd.f32 0.0, %v480
      %v482 = vpop.f32.mrf.mxu0
      %v483 = vadd.f32 0.0, %v482
      %v484 = vpop.f32.mrf.mxu0
      %v485 = vadd.f32 0.0, %v484
      %486 = vmatprep.mubr.bf16.mxu0 0
      %487 = vmatmul.mubr.bf16.gmra.mxu0 %v365
      %v488 = vpop.f32.mrf.mxu0
      %v489 = vadd.f32 0.0, %v488
      %v490 = vpop.f32.mrf.mxu0
      %v491 = vadd.f32 0.0, %v490
      %v492 = vpop.f32.mrf.mxu0
      %v493 = vadd.f32 0.0, %v492
      %v494 = vpop.f32.mrf.mxu0
      %v495 = vadd.f32 0.0, %v494
      %496 = vmatprep.mubr.bf16.mxu0 0
      %497 = vmatmul.mubr.bf16.gmra.mxu0 %v368
      %v498 = vpop.f32.mrf.mxu0
      %v499 = vadd.f32 0.0, %v498
      %v500 = vpop.f32.mrf.mxu0
      %v501 = vadd.f32 0.0, %v500
      %v502 = vpop.f32.mrf.mxu0
      %v503 = vadd.f32 0.0, %v502
      %v504 = vpop.f32.mrf.mxu0
      %v505 = vadd.f32 0.0, %v504
      %506 = vmatprep.mubr.bf16.mxu0 0
      %507 = vmatmul.mubr.bf16.gmra.mxu0 %v371
      %v508 = vpop.f32.mrf.mxu0
      %v509 = vadd.f32 0.0, %v508
      %v510 = vpop.f32.mrf.mxu0
      %v511 = vadd.f32 0.0, %v510
      %v512 = vpop.f32.mrf.mxu0
      %v513 = vadd.f32 0.0, %v512
      %v514 = vpop.f32.mrf.mxu0
      %v515 = vadd.f32 0.0, %v514
      %516 = vmatprep.mubr.bf16.mxu0 0
      %517 = vmatmul.mubr.bf16.gmra.mxu0 %v374
      %v518 = vpop.f32.mrf.mxu0
      %v519 = vadd.f32 0.0, %v518
      %v520 = vpop.f32.mrf.mxu0
      %v521 = vadd.f32 0.0, %v520
      %v522 = vpop.f32.mrf.mxu0
      %v523 = vadd.f32 0.0, %v522
      %v524 = vpop.f32.mrf.mxu0
      %v525 = vadd.f32 0.0, %v524
      %526 = vmatprep.mubr.bf16.mxu0 0
      %527 = vmatmul.mubr.bf16.gmra.mxu0 %v377
      %v528 = vpop.f32.mrf.mxu0
      %v529 = vadd.f32 0.0, %v528
      %v530 = vpop.f32.mrf.mxu0
      %v531 = vadd.f32 0.0, %v530
      %v532 = vpop.f32.mrf.mxu0
      %v533 = vadd.f32 0.0, %v532
      %v534 = vpop.f32.mrf.mxu0
      %v535 = vadd.f32 0.0, %v534
      %536 = vmatprep.mubr.bf16.mxu0 0
      %537 = vmatmul.mubr.bf16.gmra.mxu0 %v380
      %v538 = vpop.f32.mrf.mxu0
      %v539 = vadd.f32 0.0, %v538
      %v540 = vpop.f32.mrf.mxu0
      %v541 = vadd.f32 0.0, %v540
      %v542 = vpop.f32.mrf.mxu0
      %v543 = vadd.f32 0.0, %v542
      %v544 = vpop.f32.mrf.mxu0
      %v545 = vadd.f32 0.0, %v544
      %546 = vmatprep.mubr.bf16.mxu0 0
      %547 = vmatmul.mubr.bf16.gmra.mxu0 %v383
      %v548 = vpop.f32.mrf.mxu0
      %v549 = vadd.f32 0.0, %v548
      %v550 = vpop.f32.mrf.mxu0
      %v551 = vadd.f32 0.0, %v550
      %v552 = vpop.f32.mrf.mxu0
      %v553 = vadd.f32 0.0, %v552
      %v554 = vpop.f32.mrf.mxu0
      %v555 = vadd.f32 0.0, %v554
      %556 = vmatprep.mubr.bf16.mxu0 0
      %557 = vmatmul.mubr.bf16.gmra.mxu0 %v386
      %v558 = vpop.f32.mrf.mxu0
      %v559 = vadd.f32 0.0, %v558
      %v560 = vpop.f32.mrf.mxu0
      %v561 = vadd.f32 0.0, %v560
      %v562 = vpop.f32.mrf.mxu0
      %v563 = vadd.f32 0.0, %v562
      %v564 = vpop.f32.mrf.mxu0
      %v565 = vadd.f32 0.0, %v564
      %566 = vmatprep.mubr.bf16.mxu0 0
      %567 = vmatmul.mubr.bf16.gmra.mxu0 %v389
      %v568 = vpop.f32.mrf.mxu0
      %v569 = vadd.f32 0.0, %v568
      %v570 = vpop.f32.mrf.mxu0
      %v571 = vadd.f32 0.0, %v570
      %v572 = vpop.f32.mrf.mxu0
      %v573 = vadd.f32 0.0, %v572
      %v574 = vpop.f32.mrf.mxu0
      %v575 = vadd.f32 0.0, %v574
      %576 = vmatprep.mubr.bf16.mxu0 0
      %577 = vmatmul.mubr.bf16.gmra.mxu0 %v392
      %v578 = vpop.f32.mrf.mxu0
      %v579 = vadd.f32 0.0, %v578
      %v580 = vpop.f32.mrf.mxu0
      %v581 = vadd.f32 0.0, %v580
      %v582 = vpop.f32.mrf.mxu0
      %v583 = vadd.f32 0.0, %v582
      %v584 = vpop.f32.mrf.mxu0
      %v585 = vadd.f32 0.0, %v584
      %586 = vmatprep.mubr.bf16.mxu0 0
      %587 = vmatmul.mubr.bf16.gmra.mxu0 %v395
      %v588 = vpop.f32.mrf.mxu0
      %v589 = vadd.f32 0.0, %v588
      %v590 = vpop.f32.mrf.mxu0
      %v591 = vadd.f32 0.0, %v590
      %v592 = vpop.f32.mrf.mxu0
      %v593 = vadd.f32 0.0, %v592
      %v594 = vpop.f32.mrf.mxu0
      %v595 = vadd.f32 0.0, %v594
      %596 = vdwg.mxu0
      %v597 = vand.u32 2147483647, %v439
      %v598 = vand.u32 2147483647, %v441
      %v599 = vand.u32 2147483647, %v443
      %v600 = vand.u32 2147483647, %v445
      %v601 = vand.u32 2147483647, %v449
      %v602 = vand.u32 2147483647, %v451
      %v603 = vand.u32 2147483647, %v453
      %v604 = vand.u32 2147483647, %v455
      %v605 = vand.u32 2147483647, %v459
      %v606 = vand.u32 2147483647, %v461
      %v607 = vand.u32 2147483647, %v463
      %v608 = vand.u32 2147483647, %v465
      %v609 = vand.u32 2147483647, %v469
      %v610 = vand.u32 2147483647, %v471
      %v611 = vand.u32 2147483647, %v473
      %v612 = vand.u32 2147483647, %v475
      %v613 = vand.u32 2147483647, %v479
      %v614 = vand.u32 2147483647, %v481
      %v615 = vand.u32 2147483647, %v483
      %v616 = vand.u32 2147483647, %v485
      %v617 = vand.u32 2147483647, %v489
      %v618 = vand.u32 2147483647, %v491
      %v619 = vand.u32 2147483647, %v493
      %v620 = vand.u32 2147483647, %v495
      %v621 = vand.u32 2147483647, %v499
      %v622 = vand.u32 2147483647, %v501
      %v623 = vand.u32 2147483647, %v503
      %v624 = vand.u32 2147483647, %v505
      %v625 = vand.u32 2147483647, %v509
      %v626 = vand.u32 2147483647, %v511
      %v627 = vand.u32 2147483647, %v513
      %v628 = vand.u32 2147483647, %v515
      %v629 = vand.u32 2147483647, %v519
      %v630 = vand.u32 2147483647, %v521
      %v631 = vand.u32 2147483647, %v523
      %v632 = vand.u32 2147483647, %v525
      %v633 = vand.u32 2147483647, %v529
      %v634 = vand.u32 2147483647, %v531
      %v635 = vand.u32 2147483647, %v533
      %v636 = vand.u32 2147483647, %v535
      %v637 = vand.u32 2147483647, %v539
      %v638 = vand.u32 2147483647, %v541
      %v639 = vand.u32 2147483647, %v543
      %v640 = vand.u32 2147483647, %v545
      %v641 = vand.u32 2147483647, %v549
      %v642 = vand.u32 2147483647, %v551
      %v643 = vand.u32 2147483647, %v553
      %v644 = vand.u32 2147483647, %v555
      %v645 = vand.u32 2147483647, %v559
      %v646 = vand.u32 2147483647, %v561
      %v647 = vand.u32 2147483647, %v563
      %v648 = vand.u32 2147483647, %v565
      %v649 = vand.u32 2147483647, %v569
      %v650 = vand.u32 2147483647, %v571
      %v651 = vand.u32 2147483647, %v573
      %v652 = vand.u32 2147483647, %v575
      %v653 = vand.u32 2147483647, %v579
      %v654 = vand.u32 2147483647, %v581
      %v655 = vand.u32 2147483647, %v583
      %v656 = vand.u32 2147483647, %v585
      %v657 = vand.u32 2147483647, %v589
      %v658 = vand.u32 2147483647, %v591
      %v659 = vand.u32 2147483647, %v593
      %v660 = vand.u32 2147483647, %v595
      %v661 = vadd.f32 %v597, %v598
      %v662 = vadd.f32 %v661, %v599
      %v663 = vadd.f32 %v662, %v600
      %v664 = vadd.f32 %v663, %v601
      %v665 = vadd.f32 %v664, %v602
      %v666 = vadd.f32 %v665, %v603
      %v667 = vadd.f32 %v666, %v604
      %v668 = vadd.f32 %v667, %v605
      %v669 = vadd.f32 %v668, %v606
      %v670 = vadd.f32 %v669, %v607
      %v671 = vadd.f32 %v670, %v608
      %v672 = vadd.f32 %v671, %v609
      %v673 = vadd.f32 %v672, %v610
      %v674 = vadd.f32 %v673, %v611
      %v675 = vadd.f32 %v674, %v612
      %v676 = vadd.f32 %v675, %v613
      %v677 = vadd.f32 %v676, %v614
      %v678 = vadd.f32 %v677, %v615
      %v679 = vadd.f32 %v678, %v616
      %v680 = vadd.f32 %v679, %v617
      %v681 = vadd.f32 %v680, %v618
      %v682 = vadd.f32 %v681, %v619
      %v683 = vadd.f32 %v682, %v620
      %v684 = vadd.f32 %v683, %v621
      %v685 = vadd.f32 %v684, %v622
      %v686 = vadd.f32 %v685, %v623
      %v687 = vadd.f32 %v686, %v624
      %v688 = vadd.f32 %v687, %v625
      %v689 = vadd.f32 %v688, %v626
      %v690 = vadd.f32 %v689, %v627
      %v691 = vadd.f32 %v690, %v628
      %v692 = vadd.f32 %v691, %v629
      %v693 = vadd.f32 %v692, %v630
      %v694 = vadd.f32 %v693, %v631
      %v695 = vadd.f32 %v694, %v632
      %v696 = vadd.f32 %v695, %v633
      %v697 = vadd.f32 %v696, %v634
      %v698 = vadd.f32 %v697, %v635
      %v699 = vadd.f32 %v698, %v636
      %v700 = vadd.f32 %v699, %v637
      %v701 = vadd.f32 %v700, %v638
      %v702 = vadd.f32 %v701, %v639
      %v703 = vadd.f32 %v702, %v640
      %v704 = vadd.f32 %v703, %v641
      %v705 = vadd.f32 %v704, %v642
      %v706 = vadd.f32 %v705, %v643
      %v707 = vadd.f32 %v706, %v644
      %v708 = vadd.f32 %v707, %v645
      %v709 = vadd.f32 %v708, %v646
      %v710 = vadd.f32 %v709, %v647
      %v711 = vadd.f32 %v710, %v648
      %v712 = vadd.f32 %v711, %v649
      %v713 = vadd.f32 %v712, %v650
      %v714 = vadd.f32 %v713, %v651
      %v715 = vadd.f32 %v714, %v652
      %v716 = vadd.f32 %v715, %v653
      %v717 = vadd.f32 %v716, %v654
      %v718 = vadd.f32 %v717, %v655
      %v719 = vadd.f32 %v718, %v656
      %v720 = vadd.f32 %v719, %v657
      %v721 = vadd.f32 %v720, %v658
      %v722 = vadd.f32 %v721, %v659
      %v723 = vadd.f32 %v722, %v660
      %724 = vadd.xlane.f32.xlu0 %v723
      %v725 = vpop.xlane.xlu0 %724
      %v726 = vrot.slane %v725, 4
      %v727 = vadd.f32 %v725, %v726
      %v728 = vrot.slane %v727, 2
      %v729 = vadd.f32 %v727, %v728
      %v730 = vrot.slane %v729, 1
      %v731 = vadd.f32 %v729, %v730
      %s732 = vtos %v731
      %v733 = vld [vmem:[%s218] sm:$0x1]
      %v734 = vstv %s732
      %v735 = vadd.f32 %v733, %v734
      %vm736 = vcmask 0
      %737 = vst.msk [vmem:[%s218] sm:$0x1] %vm736, %v735
      %p738 = scmp.lt.s32.totalorder %s18, 1
      %s739 = scalar_select %p738, %s18, 1
      %p740 = scmp.lt.s32.totalorder %s19, 0
      %s741 = scalar_select %p740, %s19, 0
      %s742 = sadd.s32 %s741, %s739
      %s743 = scalar_lea.vmem %s2, %s742
      // Predicated region
      $region33: #{self_cos_similar_loss.1} parent=27 // pred_check
        %p744 = pneg %p108
      $region34: #{self_cos_similar_loss.1} parent=27 // pred_check_branch
        %746 = sbr.rel (%p744) target = $region36
      $region35: #{self_cos_similar_loss.1} parent=27 // pred_region
        _
      $region36: #{self_cos_similar_loss.1} parent=27 // pred_fallthru
        _
    $region28: #{self_cos_similar_loss.1} parent=5 // pred_fallthru
      _
    %p747 = scmp.le.s32.totalorder 2, %s8
    // Predicated region
    $region37: #{self_cos_similar_loss.1} parent=5 // pred_check
      %p748 = pneg %p747
    $region38: #{self_cos_similar_loss.1} parent=5 // pred_check_branch
      %750 = sbr.rel (%p748) target = $region40
    $region39: #{self_cos_similar_loss.1} parent=5 // pred_region
      %s751 = ssub.s32 %s8, 2
      // Predicated region
      $region41: #{self_cos_similar_loss.1} parent=39 // pred_check
        %p752 = pneg %p114
      $region42: #{self_cos_similar_loss.1} parent=39 // pred_check_branch
        %754 = sbr.rel (%p752) target = $region44
      $region43: #{self_cos_similar_loss.1} parent=39 // pred_region
        %p755 = scmp.lt.s32.totalorder %s21, 1
        %s756 = scalar_select %p755, %s21, 1
        %p757 = scmp.lt.s32.totalorder %s22, 0
        %s758 = scalar_select %p757, %s22, 0
        %s759 = sadd.s32 %s758, %s756
        %s760 = scalar_lea.vmem %s2, %s759
      $region44: #{self_cos_similar_loss.1} parent=39 // pred_fallthru
        _
    $region40: #{self_cos_similar_loss.1} parent=5 // pred_fallthru
      _
  $region6: #{self_cos_similar_loss.1} parent=0 // loop_footer
    %s12 = sadd.s32 1, %s8
  $region7: #{self_cos_similar_loss.1} parent=0 // loop_footer_branch
    %7 = sbr.rel target = $region3
  $region8: #{self_cos_similar_loss.1} parent=0 // loop_exit
    _

</llo_original>
